<compile_context>
chip_gen: v7x
topology: tpu7x:2x2x1
jax: 0.10.0
libtpu: 0.0.40
codegen_flags: <defaults>
</compile_context>

<pallas_src>
import jax
import jax.numpy as jnp
from jax.experimental import pallas as pl
from jax.experimental.pallas import tpu as pltpu


def t2v_kernel(x_ref, p_ref, o_ref):
    # x_ref: (tm4, fold)  p_ref: (fold+2, lanes)  o_ref: (tm4, lanes)
    # p_ref rows: 0..fold-1 = masked/tiled weights W_k, fold = tiled bias,
    #             fold+1    = sin mask (1.0 -> sin, 0.0 -> identity).
    fold = x_ref.shape[-1]
    x = x_ref[...]                               # (tm4, fold)

    z = p_ref[fold:fold + 1, :]                  # tiled bias, (1, lanes)
    z = z + x[:, 0:1] * p_ref[0:1, :]            # broadcast FMA -> (tm4, lanes)
    for k in range(1, fold):
        # W_k is zero outside lane-group k, so the extra adds are exact.
        z = z + x[:, k:k + 1] * p_ref[k:k + 1, :]

    use_sin = p_ref[fold + 1:fold + 2, :] != 0.0  # (1, lanes) broadcast mask
    o_ref[...] = jnp.where(use_sin, jnp.sin(z), z).astype(o_ref.dtype)


def embedding_forward(x, w, b, w0, b0, *, tm4=8192):
    """Forward of `Embedding` (SineActivation + eval-mode Dropout).

    x: (B, T, n_in) float32; returns (B, T, n_embd) float32.
    """
    B, T, n_in = x.shape
    n_embd = w.shape[1] + 1
    # The torch reference adds b of shape (n_in, n_embd-1) to a (B, T, n_embd-1)
    # matmul result; that broadcast is only well-defined for n_in == 1 (the
    # standard Time2Vec usage), which is what lets the matmul collapse to a
    # broadcast multiply.
    assert n_in == 1, "torch-reference bias broadcast requires n_in == 1"

    # Lane-dense fold: pack `fold` consecutive output rows per 128-lane vreg.
    fold = 128 // n_embd if 128 % n_embd == 0 else 1
    lanes = n_embd * fold

    M = B * T
    M4 = pl.cdiv(M, fold)                       # folded rows needed

    # Tile selection: big tiles (multiple of 8 sublanes), clamped for tiny
    # inputs; keep >= 2 grid steps when there is enough work (v7x dual TC).
    tm4 = max(8, pl.cdiv(tm4, 8) * 8)
    tm4 = max(8, min(tm4, pl.cdiv(M4, 8) * 8))
    if M4 > 16 and pl.cdiv(M4, tm4) < 2:
        tm4 = max(8, pl.cdiv(pl.cdiv(M4, 2), 8) * 8)
    M4_pad = pl.cdiv(M4, tm4) * tm4
    M_pad = M4_pad * fold

    x2 = x.reshape(M, 1)
    if M_pad != M:
        x2 = jnp.pad(x2, ((0, M_pad - M), (0, 0)))
    x_folded = x2.reshape(M4_pad, fold)         # lane-dense input view

    # Fused parameter block, (fold + 2, lanes):
    #   rows 0..fold-1 : W_k = tiled [w | w0] masked to lane-group k
    #   row  fold      : tiled [b | b0]
    #   row  fold + 1  : sin mask (1.0 for the w part, 0.0 for the w0 column)
    w_full = jnp.concatenate([w, w0], axis=-1).reshape(n_embd)
    b_full = jnp.concatenate([b, b0], axis=-1).reshape(n_embd)
    w_tiled = jnp.tile(w_full, fold)            # (lanes,)
    b_tiled = jnp.tile(b_full, fold)            # (lanes,)
    grp = jnp.arange(lanes) // n_embd           # lane-group id per lane
    w_rows = jnp.where(grp[None, :] == jnp.arange(fold)[:, None],
                       w_tiled[None, :], 0.0)   # (fold, lanes)
    sin_mask = jnp.tile(
        jnp.concatenate([jnp.ones((n_embd - 1,), x.dtype),
                         jnp.zeros((1,), x.dtype)]), fold)
    params = jnp.concatenate(
        [w_rows, b_tiled[None, :], sin_mask[None, :]], axis=0
    ).astype(x.dtype)                           # (fold + 2, lanes)

    out = pl.pallas_call(
        t2v_kernel,
        out_shape=jax.ShapeDtypeStruct((M4_pad, lanes), x.dtype),
        grid_spec=pltpu.PrefetchScalarGridSpec(
            num_scalar_prefetch=0,
            grid=(M4_pad // tm4,),
            in_specs=[
                pl.BlockSpec((tm4, fold), lambda i: (i, 0)),
                pl.BlockSpec((fold + 2, lanes), lambda i: (0, 0)),
            ],
            out_specs=pl.BlockSpec((tm4, lanes), lambda i: (i, 0)),
        ),
        compiler_params=pltpu.CompilerParams(
            dimension_semantics=("parallel",),
            vmem_limit_bytes=32 * 1024 * 1024,
        ),
    )(x_folded, params)

    # (M4_pad, lanes) row-major == (M_pad, n_embd) row-major: pure view.
    out = out.reshape(M_pad, n_embd)[:M].reshape(B, T, n_embd)

    # nn.Dropout(config.embd_pdrop) in eval/inference mode is the identity.
    # TODO(synk): training-mode dropout (pltpu.prng_random_bits mask) not emitted.
    return out


if __name__ == "__main__":
    # config: n_in=1, n_embd=32 ; input x: (B=2, T=8, n_in=1)
    B, T, n_in, n_embd = 2, 8, 1, 32

    key = jax.random.PRNGKey(0)
    kx, kw0, kb0, kw, kb = jax.random.split(key, 5)

    x = jax.random.normal(kx, (B, T, n_in), dtype=jnp.float32)
    # deterministic "torch.randn"-style parameter init (same shapes as __init__)
    w0 = jax.random.normal(kw0, (n_in, 1), dtype=jnp.float32)
    b0 = jax.random.normal(kb0, (n_in, 1), dtype=jnp.float32)
    w = jax.random.normal(kw, (n_in, n_embd - 1), dtype=jnp.float32)
    b = jax.random.normal(kb, (n_in, n_embd - 1), dtype=jnp.float32)

    out = embedding_forward(x, w, b, w0, b0)
    out = jax.block_until_ready(out)

    # exact pure-JAX reference of t2v (n_in == 1 => broadcast, no matmul rounding)
    x2 = x.reshape(B * T, n_in)
    v1 = jnp.sin(x2 * w + b)          # (M, n_embd-1)
    v2 = x2 * w0 + b0                 # (M, 1)
    ref = jnp.concatenate([v1, v2], axis=-1).reshape(B, T, n_embd)

    assert out.shape == (B, T, n_embd)
    assert jnp.allclose(out, ref, atol=1e-5, rtol=1e-5)

    print("KERNEL_OK")
</pallas_src>

<mosaic_0001>
module attributes {stable_mosaic.version = 11 : i64} {
  func.func @t2v_kernel(%arg0: i32, %arg1: memref<8x4xf32, #tpu.memory_space<vmem>>, %arg2: memref<6x128xf32, #tpu.memory_space<vmem>>, %arg3: memref<8x128xf32, #tpu.memory_space<vmem>>) attributes {dimension_semantics = [#tpu.dimension_semantics<parallel>], iteration_bounds = array<i64: 1>, scalar_prefetch = 0 : i64, scratch_operands = 0 : i64, tpu.core_type = #tpu.core_type<tc>, window_params = [{transform_indices = @transform_0, window_bounds = array<i64: 8, 4>}, {pipeline_mode = #tpu.pipeline_mode<synchronous>, transform_indices = @transform_1, window_bounds = array<i64: 6, 128>}, {transform_indices = @transform_2, window_bounds = array<i64: 8, 128>}]} {
    %c0 = arith.constant 0 : index
    %c0_0 = arith.constant 0 : index
    %0 = vector.load %arg1[%c0, %c0_0] : memref<8x4xf32, #tpu.memory_space<vmem>>, vector<8x4xf32>
    %c4 = arith.constant 4 : index
    %c0_1 = arith.constant 0 : index
    %1 = vector.load %arg2[%c4, %c0_1] : memref<6x128xf32, #tpu.memory_space<vmem>>, vector<1x128xf32>
    %2 = vector.extract_strided_slice %0 {offsets = [0, 0], sizes = [8, 1], strides = [1, 1]} : vector<8x4xf32> to vector<8x1xf32>
    %c0_2 = arith.constant 0 : index
    %c0_3 = arith.constant 0 : index
    %3 = vector.load %arg2[%c0_2, %c0_3] : memref<6x128xf32, #tpu.memory_space<vmem>>, vector<1x128xf32>
    %4 = vector.broadcast %2 : vector<8x1xf32> to vector<8x128xf32>
    %5 = vector.broadcast %3 : vector<1x128xf32> to vector<8x128xf32>
    %6 = arith.mulf %4, %5 : vector<8x128xf32>
    %7 = vector.broadcast %1 : vector<1x128xf32> to vector<8x128xf32>
    %8 = arith.addf %7, %6 : vector<8x128xf32>
    %9 = vector.extract_strided_slice %0 {offsets = [0, 1], sizes = [8, 1], strides = [1, 1]} : vector<8x4xf32> to vector<8x1xf32>
    %c1 = arith.constant 1 : index
    %c0_4 = arith.constant 0 : index
    %10 = vector.load %arg2[%c1, %c0_4] : memref<6x128xf32, #tpu.memory_space<vmem>>, vector<1x128xf32>
    %11 = vector.broadcast %9 : vector<8x1xf32> to vector<8x128xf32>
    %12 = vector.broadcast %10 : vector<1x128xf32> to vector<8x128xf32>
    %13 = arith.mulf %11, %12 : vector<8x128xf32>
    %14 = arith.addf %8, %13 : vector<8x128xf32>
    %15 = vector.extract_strided_slice %0 {offsets = [0, 2], sizes = [8, 1], strides = [1, 1]} : vector<8x4xf32> to vector<8x1xf32>
    %c2 = arith.constant 2 : index
    %c0_5 = arith.constant 0 : index
    %16 = vector.load %arg2[%c2, %c0_5] : memref<6x128xf32, #tpu.memory_space<vmem>>, vector<1x128xf32>
    %17 = vector.broadcast %15 : vector<8x1xf32> to vector<8x128xf32>
    %18 = vector.broadcast %16 : vector<1x128xf32> to vector<8x128xf32>
    %19 = arith.mulf %17, %18 : vector<8x128xf32>
    %20 = arith.addf %14, %19 : vector<8x128xf32>
    %21 = vector.extract_strided_slice %0 {offsets = [0, 3], sizes = [8, 1], strides = [1, 1]} : vector<8x4xf32> to vector<8x1xf32>
    %c3 = arith.constant 3 : index
    %c0_6 = arith.constant 0 : index
    %22 = vector.load %arg2[%c3, %c0_6] : memref<6x128xf32, #tpu.memory_space<vmem>>, vector<1x128xf32>
    %23 = vector.broadcast %21 : vector<8x1xf32> to vector<8x128xf32>
    %24 = vector.broadcast %22 : vector<1x128xf32> to vector<8x128xf32>
    %25 = arith.mulf %23, %24 : vector<8x128xf32>
    %26 = arith.addf %20, %25 : vector<8x128xf32>
    %c5 = arith.constant 5 : index
    %c0_7 = arith.constant 0 : index
    %27 = vector.load %arg2[%c5, %c0_7] : memref<6x128xf32, #tpu.memory_space<vmem>>, vector<1x128xf32>
    %cst = arith.constant 0.000000e+00 : f32
    %28 = vector.broadcast %cst : f32 to vector<1x128xf32>
    %29 = arith.cmpf one, %27, %28 : vector<1x128xf32>
    %30 = math.sin %26 : vector<8x128xf32>
    %31 = vector.shape_cast %29 : vector<1x128xi1> to vector<1x128xi1>
    %32 = vector.broadcast %31 : vector<1x128xi1> to vector<8x128xi1>
    %33 = arith.select %32, %30, %26 : vector<8x128xi1>, vector<8x128xf32>
    %c0_8 = arith.constant 0 : index
    %c0_9 = arith.constant 0 : index
    %34 = vector.load %arg3[%c0_8, %c0_9] : memref<8x128xf32, #tpu.memory_space<vmem>>, vector<8x128xf32>
    tpu.vector_store %arg3[%c0_8, %c0_9], %33 {strides = array<i32>} : memref<8x128xf32, #tpu.memory_space<vmem>>, vector<8x128xf32>,
    return
  }
  func.func @transform_0(%arg0: i32) -> (i32, i32) {
    %c0_i32 = arith.constant 0 : i32
    %c0_i32_0 = arith.constant 0 : i32
    return %arg0, %c0_i32 : i32, i32
  }
  func.func @transform_1(%arg0: i32) -> (i32, i32) {
    %c0_i32 = arith.constant 0 : i32
    %c0_i32_0 = arith.constant 0 : i32
    %c0_i32_1 = arith.constant 0 : i32
    return %c0_i32, %c0_i32_0 : i32, i32
  }
  func.func @transform_2(%arg0: i32) -> (i32, i32) {
    %c0_i32 = arith.constant 0 : i32
    %c0_i32_0 = arith.constant 0 : i32
    return %arg0, %c0_i32 : i32, i32
  }
}

</mosaic_0001>

<llo_original>
// kernel: tpu_custom_call.1
$region0: #{tpu_custom_call.1}
  #allocation0 [shape = 'u32[]', space=smem, size = 0x4, offset = 0x4, fixed_abs, tag = 'smem constant byte address 0x4 - core index']
  #allocation1 [shape = 'u32[144,128]{1,0:T(1,128)}', space=vmem, size = 0x12000, scoped, tag = 'internal scratch']
  %s0 = inlined_call_operand.vmem [shape: f32[8,4], index: 0, kind: input, shape index: {}]
  %s1 = inlined_call_operand.vmem [shape: f32[6,128], index: 1, kind: input, shape index: {}]
  %s2 = inlined_call_operand.hbm [shape: f32[8,128], index: 2, kind: output, shape index: {}]
  %s3 = sld [smem:[#allocation0]]
  $region18: #{tpu_custom_call.1} parent=0
    _
  %s5 = ssub.s32 1, %s3
  %s6 = scalar_select 0, %s5, %s3
  $region1: #{tpu_custom_call.1} parent=0
    #allocation2 [shape = 'u8[4096]{0}', space=vmem, size = 0x1000, scoped, tag = 'output window, operand 0, single buffered']
    #allocation3 [shape = 's32[1]{0}', space=sflag, size = 0x4, scoped, tag = 'scoped memory for tpu_custom_call.1']
    %7 = vsyncpa [#allocation3], 0
    // Predicated region
    $region2: #{tpu_custom_call.1} parent=1 // pred_check
      _
    $region3: #{tpu_custom_call.1} parent=1 // pred_check_branch
      %9 = sbr.rel (0) target = $region5
    $region4: #{tpu_custom_call.1} parent=1 // pred_region
      _
    $region5: #{tpu_custom_call.1} parent=1 // pred_fallthru
      _
    // Predicated region
    $region6: #{tpu_custom_call.1} parent=1 // pred_check
      _
    $region7: #{tpu_custom_call.1} parent=1 // pred_check_branch
      %11 = sbr.rel (0) target = $region9
    $region8: #{tpu_custom_call.1} parent=1 // pred_region
      _
    $region9: #{tpu_custom_call.1} parent=1 // pred_fallthru
      _
    %v12 = vld [vmem:[%s0] sm:$0xff]
    %v13 = vld [vmem:[%s1 + $0x4] sm:$0x1]
    %v14 = vld [vmem:[%s1] sm:$0x1]
    %16 = vset.pattern.permute.xlu0 0
    %17 = vperm.xlu0 %16, %v12
    %v18 = vpop.permute.xlu0 %17
    %v20 = vlaneseq
    %v21 = vshrl.u32 %v20, 7
    %v22 = vsub.s32 0, %v21
    %v23 = vrot.slane %v14, %v22
    %v24 = vmul.f32 %v18, %v23
    %v25 = vlaneseq
    %v26 = vshrl.u32 %v25, 7
    %v27 = vsub.s32 0, %v26
    %v28 = vrot.slane %v13, %v27
    %v29 = vadd.f32 %v28, %v24
    %v30 = vld [vmem:[%s1 + $0x1] sm:$0x1]
    %31 = vset.pattern.permute.xlu0 1
    %32 = vperm.xlu0 %31, %v12
    %v33 = vpop.permute.xlu0 %32
    %v35 = vlaneseq
    %v36 = vshrl.u32 %v35, 7
    %v37 = vsub.s32 0, %v36
    %v38 = vrot.slane %v30, %v37
    %v39 = vmul.f32 %v33, %v38
    %v40 = vadd.f32 %v29, %v39
    %v41 = vld [vmem:[%s1 + $0x2] sm:$0x1]
    %42 = vset.pattern.permute.xlu0 2
    %43 = vperm.xlu0 %42, %v12
    %v44 = vpop.permute.xlu0 %43
    %v46 = vlaneseq
    %v47 = vshrl.u32 %v46, 7
    %v48 = vsub.s32 0, %v47
    %v49 = vrot.slane %v41, %v48
    %v50 = vmul.f32 %v44, %v49
    %v51 = vadd.f32 %v40, %v50
    %v52 = vld [vmem:[%s1 + $0x3] sm:$0x1]
    %53 = vset.pattern.permute.xlu0 3
    %54 = vperm.xlu0 %53, %v12
    %v55 = vpop.permute.xlu0 %54
    %v57 = vlaneseq
    %v58 = vshrl.u32 %v57, 7
    %v59 = vsub.s32 0, %v58
    %v60 = vrot.slane %v52, %v59
    %v61 = vmul.f32 %v55, %v60
    %v62 = vadd.f32 %v51, %v61
    %v63 = vld [vmem:[%s1 + $0x5] sm:$0x1]
    %vm64 = vcmp.ne.f32.partialorder %v63, 0.0
    %v65 = vand.u32 2147483647, %v62
    %vm66 = vcmp.le.f32.partialorder %v65, 0.7853982
    %vm67 = vcmp.lt.s32.totalorder %v62, 0
    %v68 = vand.u32 %v62, 2139095040
    %v69 = vshrl.u32 %v68, 23
    %v70 = vsub.s32 %v69, 127
    %v71 = vand.u32 2147483647, %v62
    %v72 = vand.u32 %v71, 8388607
    %v73 = vor.u32 %v72, 8388608
    %v74 = vsub.s32 0, %v73
    %v75 = vadd.s32 %v70, 1
    %vm76 = vcmp.gt.s32.totalorder %v75, 0
    %v77 = vsel %vm76, %v75, 0
    %v78 = vshrl.u32 %v77, 5
    %v79 = vand.u32 %v77, 31
    %v80 = vsub.s32 32, %v79
    %v81 = vshrl.u32 683565275, %v80
    %v82 = vshll.u32 683565275, %v79
    %v83 = vshrl.u32 2475754826, %v80
    %v84 = vor.u32 %v82, %v83
    %v85 = vshll.u32 2475754826, %v79
    %v86 = vshrl.u32 2131351028, %v80
    %v87 = vor.u32 %v85, %v86
    %v88 = vshll.u32 2131351028, %v79
    %v89 = vshrl.u32 2102212464, %v80
    %v90 = vor.u32 %v88, %v89
    %v91 = vshll.u32 2102212464, %v79
    %v92 = vshrl.u32 920167782, %v80
    %v93 = vor.u32 %v91, %v92
    %v94 = vshll.u32 920167782, %v79
    %v95 = vshrl.u32 1326507024, %v80
    %v96 = vor.u32 %v94, %v95
    %vm97 = vcmp.lt.s32.totalorder %v78, 1
    %vm98 = vcmp.lt.s32.totalorder %v78, 2
    %vm99 = vcmp.lt.s32.totalorder %v78, 3
    %vm100 = vcmp.lt.s32.totalorder %v78, 4
    %v101 = vsel %vm97, %v81, %v84
    %v102 = vsel %vm100, %v90, 2102212464
    %v103 = vsel %vm99, %v87, %v102
    %v104 = vsel %vm98, %v101, %v103
    %v105 = vsel %vm97, %v84, %v87
    %v106 = vsel %vm100, %v93, 920167782
    %v107 = vsel %vm99, %v90, %v106
    %v108 = vsel %vm98, %v105, %v107
    %v109 = vsel %vm97, %v87, %v90
    %v110 = vsel %vm100, %v96, 1326507024
    %v111 = vsel %vm99, %v93, %v110
    %v112 = vsel %vm98, %v109, %v111
    %v113 = vshll.u32 %v73, 8
    %v114 = vmul.u32.u64.compose %v113, %v112
    %v115 = vextract.low.u32 %v114
    %v116 = vextract.high.u32 %v114
    %v117 = vmul.u32.u64.compose %v113, %v108
    %v118 = vextract.low.u32 %v117
    %v119 = vextract.high.u32 %v117
    %v120 = vmul.u32 %v113, %v104
    %v121 = vadd.s32 %v116, %v118
    %vm122 = vc.u32 %v116, %v118
    %v123 = vadd.s32 %v119, 1
    %v124 = vsel %vm122, %v123, %v119
    %v125 = vadd.s32 %v120, %v124
    %v126 = vadd.s32 %v125, 536870912
    %v127 = vshrl.u32 %v126, 30
    %v128 = vshll.u32 %v127, 30
    %v129 = vsub.s32 %v125, %v128
    %vm130 = vcmp.lt.s32.totalorder %v129, 0
    %v131 = vsub.s32 0, %v129
    %v132 = vsel %vm130, %v131, %v129
    %v133 = vclz %v132
    %v134 = vsub.s32 %v133, 2
    %vm135 = vcmp.gt.s32.totalorder 0, %v134
    %v136 = vsel %vm135, 0, %v134
    %v137 = vsub.s32 32, %v136
    %v138 = vshll.u32 %v129, %v136
    %v139 = vshrl.u32 %v121, %v137
    %v140 = vor.u32 %v138, %v139
    %v141 = vsub.s32 4294967266, %v136
    %v142 = vadd.s32 %v141, 127
    %v143 = vshll.u32 %v142, 23
    %v144 = vor.u32 4788187, %v143
    %v145 = vand.u32 2147483647, %v144
    %v147 = vcvt.s32.f32 %v140
    %v148 = vmul.f32 %v147, %v145
    %v149 = vxor.u32 %v148, 2147483648
    %v150 = vsel %vm67, %v149, %v148
    %v151 = vsub.s32 4, %v127
    %v152 = vsel %vm67, %v151, %v127
    %v153 = vsel %vm66, %v62, %v150
    %v154 = vsel %vm66, 0, %v152
    %v155 = vcosq.f32.pop %v153
    %v156 = vsinq.f32.pop %v153
    %vm157 = vweird.f32 %v62
    %v158 = vadd.s32 %v154, 3
    %v159 = vand.u32 %v158, 3
    %vm160 = vcmp.lt.s32.totalorder %v159, 2
    %vm161 = vcmp.eq.s32.totalorder %v159, 0
    %v162 = vxor.u32 %v156, 2147483648
    %v163 = vsel %vm161, %v155, %v162
    %vm164 = vcmp.eq.s32.totalorder %v159, 2
    %v165 = vxor.u32 %v155, 2147483648
    %v166 = vsel %vm164, %v165, %v156
    %v167 = vsel %vm160, %v163, %v166
    %v168 = vsel %vm157, nan, %v167
    %v169 = vsel %vm64, 1, 0
    %v170 = vlaneseq
    %v171 = vshrl.u32 %v170, 7
    %v172 = vsub.s32 0, %v171
    %v173 = vrot.slane %v169, %v172
    %vm174 = vcmp.eq.s32.totalorder %v173, 1
    %v175 = vsel %vm174, %v168, %v62
    %176 = vst [vmem:[#allocation2] sm:$0xff] %v175
    // Predicated region
    $region10: #{tpu_custom_call.1} parent=1 // pred_check
      _
    $region11: #{tpu_custom_call.1} parent=1 // pred_check_branch
      %178 = sbr.rel (0) target = $region13
    $region12: #{tpu_custom_call.1} parent=1 // pred_region
      %s180 = ssub.s32 128, 128
      %181 = vsyncadd [#allocation3], %s180
      %s183 = sshll.u32 [#allocation2], 4
      %s184 = int_to_ptr.vmem [resolvable:$true] %s183
      %186 = dma.vmem_to_hbm [thread:$0]  %s184, 128, %s2, [#allocation3]
    $region13: #{tpu_custom_call.1} parent=1 // pred_fallthru
      _
    // Predicated region
    $region14: #{tpu_custom_call.1} parent=1 // pred_check
      _
    $region15: #{tpu_custom_call.1} parent=1 // pred_check_branch
      %188 = sbr.rel (0) target = $region17
    $region16: #{tpu_custom_call.1} parent=1 // pred_region
      %189 = dma.done [#allocation3], 128
    $region17: #{tpu_custom_call.1} parent=1 // pred_fallthru
      _
    %190 = vsyncpa [#allocation3], 1

</llo_original>
